<compile_context>
chip_gen: v7x
topology: tpu7x:2x2x1
jax: 0.10.0
libtpu: 0.0.40
codegen_flags: <defaults>
</compile_context>

<pallas_src>
import jax
import jax.numpy as jnp
from jax.experimental import pallas as pl
from jax.experimental.pallas import tpu as pltpu


# Conservative budget for the double-buffered blocks (fits v5e/v6e/v7x) plus an
# explicit scoped-VMEM limit so the compiler allows it on every generation.
_VMEM_BUDGET_BYTES = 20 * 1024 * 1024
_VMEM_LIMIT_BYTES = 32 * 1024 * 1024
_MAX_BLOCK_BATCH = 1024


def _round_up(v, m):
    return ((v + m - 1) // m) * m


def _sum_pool_kernel(x_ref, o_ref):
    # x_ref: (BB, S, E), o_ref: (BB, E).  Accumulate in f32 (bf16-safe).
    o_ref[...] = jnp.sum(x_ref[...].astype(jnp.float32), axis=1).astype(o_ref.dtype)


def _masked_sum_pool_kernel(mask_ref, x_ref, o_ref):
    # mask_ref: (BB, S, 1), x_ref: (BB, S, E), o_ref: (BB, E).
    # VPU multiply (lane-broadcast of the size-1 mask lane) + XLU sublane
    # reduce -- avoids BB serialized M=1 MXU matmuls in this HBM-bound kernel.
    m = mask_ref[...].astype(jnp.float32)
    x = x_ref[...].astype(jnp.float32)
    o_ref[...] = jnp.sum(m * x, axis=1).astype(o_ref.dtype)


def _choose_block_batch(B, S, E, x_itemsize, out_itemsize, mask_itemsize):
    """Pick the batch-block size BB: multiple of 8 (sublane-dense out block),
    sized so double-buffered padded tiles fit the VMEM budget, dividing the
    8-padded batch (so wrapper padding is <= 7 rows), and leaving >= 2 grid
    steps when there is enough work (v7x has 2 TensorCores)."""
    s_pad = _round_up(S, 8)
    e_pad = _round_up(E, 128)
    per_row = 2 * s_pad * e_pad * x_itemsize           # x block, double-buffered
    per_row += 2 * e_pad * out_itemsize                # out block, double-buffered
    if mask_itemsize:
        per_row += 2 * s_pad * 128 * mask_itemsize     # (S,1) tile pads lanes to 128
    cap = _VMEM_BUDGET_BYTES // max(per_row, 1)
    cap = max(8, min(cap, _MAX_BLOCK_BATCH))
    cap = (cap // 8) * 8

    b8 = _round_up(B, 8)
    bb = min(cap, b8)
    # Prefer >= 2 grid steps when there's enough work (megacore sharding).
    if b8 >= 16 and bb >= b8:
        bb = max(8, ((b8 // 2) // 8) * 8)
    # Largest multiple of 8 that divides the 8-padded batch.
    while bb > 8 and b8 % bb != 0:
        bb -= 8
    return bb


def sum_pooling(x, mask=None):
    """Pallas TPU implementation of SumPooling.forward.

    x:    (B, S, E)
    mask: (B, 1, S) or None
    out:  (B, E)
    """
    B, S, E = x.shape
    out_dtype = x.dtype
    mask_itemsize = jnp.dtype(mask.dtype).itemsize if mask is not None else 0

    bb = _choose_block_batch(
        B, S, E,
        jnp.dtype(x.dtype).itemsize,
        jnp.dtype(out_dtype).itemsize,
        mask_itemsize,
    )

    # TODO(synk): for very long S / wide E where even a (8, S, E) block exceeds
    # the VMEM budget, add a second "arbitrary" grid axis over S with an f32
    # VMEM accumulator + pl.when init/finalize instead of loading the full
    # (S, E) slab per batch row (needed mainly for v7x's 64 MiB VMEM).

    b_pad = _round_up(B, bb)
    if b_pad != B:
        x = jnp.pad(x, ((0, b_pad - B), (0, 0), (0, 0)))

    grid = (b_pad // bb,)
    x_spec = pl.BlockSpec((bb, S, E), lambda b: (b, 0, 0))
    o_spec = pl.BlockSpec((bb, E), lambda b: (b, 0))
    out_shape = jax.ShapeDtypeStruct((b_pad, E), out_dtype)
    compiler_params = pltpu.CompilerParams(
        dimension_semantics=("parallel",),
        vmem_limit_bytes=_VMEM_LIMIT_BYTES,
    )

    if mask is None:
        out = pl.pallas_call(
            _sum_pool_kernel,
            out_shape=out_shape,
            grid_spec=pltpu.PrefetchScalarGridSpec(
                num_scalar_prefetch=0,
                grid=grid,
                in_specs=[x_spec],
                out_specs=o_spec,
            ),
            compiler_params=compiler_params,
        )(x)
    else:
        # Present the mask as (B, S, 1) so the in-kernel multiply is a lane
        # broadcast against x's (S, E) tiles (no in-kernel relayout).
        mask_t = jnp.swapaxes(mask, 1, 2)                 # (B, S, 1), tiny copy
        if b_pad != B:
            mask_t = jnp.pad(mask_t, ((0, b_pad - B), (0, 0), (0, 0)))
        mask_spec = pl.BlockSpec((bb, S, 1), lambda b: (b, 0, 0))
        out = pl.pallas_call(
            _masked_sum_pool_kernel,
            out_shape=out_shape,
            grid_spec=pltpu.PrefetchScalarGridSpec(
                num_scalar_prefetch=0,
                grid=grid,
                in_specs=[mask_spec, x_spec],
                out_specs=o_spec,
            ),
            compiler_params=compiler_params,
        )(mask_t, x)

    return out[:B] if b_pad != B else out


if __name__ == "__main__":
    key = jax.random.PRNGKey(0)
    kx, km, kx2, km2 = jax.random.split(key, 4)

    # Case 1: small shape from the module spec (B=2, S=8, E=32).
    B, S, E = 2, 8, 32
    x = jax.random.normal(kx, (B, S, E), dtype=jnp.float32)
    mask = (jax.random.uniform(km, (B, 1, S)) > 0.3).astype(jnp.float32)

    out_nomask = jax.block_until_ready(sum_pooling(x, None))
    ref_nomask = jnp.sum(x, axis=1)
    assert out_nomask.shape == (B, E)
    assert jnp.allclose(out_nomask, ref_nomask, atol=1e-5, rtol=1e-5)

    out_mask = jax.block_until_ready(sum_pooling(x, mask))
    ref_mask = jnp.einsum("bqs,bse->bqe", mask, x)[:, 0, :]
    assert out_mask.shape == (B, E)
    assert jnp.allclose(out_mask, ref_mask, atol=1e-5, rtol=1e-5)

    # Case 2: batch not a multiple of 8 (exercises batch padding + slicing).
    B2 = 10
    x2 = jax.random.normal(kx2, (B2, S, E), dtype=jnp.float32)
    mask2 = (jax.random.uniform(km2, (B2, 1, S)) > 0.3).astype(jnp.float32)

    out2_nomask = jax.block_until_ready(sum_pooling(x2, None))
    assert out2_nomask.shape == (B2, E)
    assert jnp.allclose(out2_nomask, jnp.sum(x2, axis=1), atol=1e-5, rtol=1e-5)

    out2_mask = jax.block_until_ready(sum_pooling(x2, mask2))
    ref2_mask = jnp.einsum("bqs,bse->bqe", mask2, x2)[:, 0, :]
    assert out2_mask.shape == (B2, E)
    assert jnp.allclose(out2_mask, ref2_mask, atol=1e-5, rtol=1e-5)

    print("KERNEL_OK")
</pallas_src>

<mosaic_0001>
module attributes {stable_mosaic.version = 11 : i64} {
  func.func @_sum_pool_kernel(%arg0: i32, %arg1: memref<8x8x32xf32, #tpu.memory_space<vmem>>, %arg2: memref<8x32xf32, #tpu.memory_space<vmem>>) attributes {dimension_semantics = [#tpu.dimension_semantics<parallel>], iteration_bounds = array<i64: 1>, scalar_prefetch = 0 : i64, scratch_operands = 0 : i64, tpu.core_type = #tpu.core_type<tc>, window_params = [{transform_indices = @transform_0, window_bounds = array<i64: 8, 8, 32>}, {transform_indices = @transform_1, window_bounds = array<i64: 8, 32>}]} {
    %c0 = arith.constant 0 : index
    %c0_0 = arith.constant 0 : index
    %c0_1 = arith.constant 0 : index
    %0 = vector.load %arg1[%c0, %c0_0, %c0_1] : memref<8x8x32xf32, #tpu.memory_space<vmem>>, vector<8x8x32xf32>
    %cst = arith.constant dense<0.000000e+00> : vector<8x32xf32>
    %1 = vector.multi_reduction <add>, %0, %cst [1] : vector<8x8x32xf32> to vector<8x32xf32>
    %c0_2 = arith.constant 0 : index
    %c0_3 = arith.constant 0 : index
    %2 = vector.load %arg2[%c0_2, %c0_3] : memref<8x32xf32, #tpu.memory_space<vmem>>, vector<8x32xf32>
    tpu.vector_store %arg2[%c0_2, %c0_3], %1 {strides = array<i32>} : memref<8x32xf32, #tpu.memory_space<vmem>>, vector<8x32xf32>,
    return
  }
  func.func @transform_0(%arg0: i32) -> (i32, i32, i32) {
    %c0_i32 = arith.constant 0 : i32
    %c0_i32_0 = arith.constant 0 : i32
    %c0_i32_1 = arith.constant 0 : i32
    return %arg0, %c0_i32, %c0_i32_0 : i32, i32, i32
  }
  func.func @transform_1(%arg0: i32) -> (i32, i32) {
    %c0_i32 = arith.constant 0 : i32
    %c0_i32_0 = arith.constant 0 : i32
    return %arg0, %c0_i32 : i32, i32
  }
}

</mosaic_0001>

<llo_original>
// kernel: tpu_custom_call.1
$region0: #{tpu_custom_call.1}
  #allocation0 [shape = 'u32[]', space=smem, size = 0x4, offset = 0x4, fixed_abs, tag = 'smem constant byte address 0x4 - core index']
  #allocation1 [shape = 'u32[144,128]{1,0:T(1,128)}', space=vmem, size = 0x12000, scoped, tag = 'internal scratch']
  %s0 = inlined_call_operand.hbm [shape: f32[8,8,32], index: 0, kind: input, shape index: {}]
  %s1 = inlined_call_operand.hbm [shape: f32[8,32], index: 1, kind: output, shape index: {}]
  %s2 = sld [smem:[#allocation0]]
  $region18: #{tpu_custom_call.1} parent=0
    _
  %s4 = ssub.s32 1, %s2
  %s5 = scalar_select 0, %s4, %s2
  $region1: #{tpu_custom_call.1} parent=0
    #allocation2 [shape = 'u8[32768]{0}', space=vmem, size = 0x8000, scoped, tag = 'input window, operand 0, single buffered']
    #allocation3 [shape = 's32[1]{0}', space=sflag, size = 0x4, scoped, tag = 'scoped memory for tpu_custom_call.1']
    #allocation4 [shape = 's32[1]{0}', space=sflag, size = 0x4, scoped, tag = 'scoped memory for tpu_custom_call.1']
    #allocation5 [shape = 'u8[4096]{0}', space=vmem, size = 0x1000, scoped, tag = 'output window, operand 0, single buffered']
    %6 = vsyncpa [#allocation3], 0
    %7 = vsyncpa [#allocation4], 0
    // Predicated region
    $region2: #{tpu_custom_call.1} parent=1 // pred_check
      _
    $region3: #{tpu_custom_call.1} parent=1 // pred_check_branch
      %9 = sbr.rel (0) target = $region5
    $region4: #{tpu_custom_call.1} parent=1 // pred_region
      %s11 = ssub.s32 1024, 1024
      %12 = vsyncadd [#allocation3], %s11
      %s13 = sshll.u32 [#allocation2], 4
      %s14 = int_to_ptr.vmem [resolvable:$true] %s13
      %19 = dma.hbm_to_vmem [thread:$0]  %s0, 1024, %s14, [#allocation3], 128, 128, 8
    $region5: #{tpu_custom_call.1} parent=1 // pred_fallthru
      _
    // Predicated region
    $region6: #{tpu_custom_call.1} parent=1 // pred_check
      _
    $region7: #{tpu_custom_call.1} parent=1 // pred_check_branch
      %21 = sbr.rel (0) target = $region9
    $region8: #{tpu_custom_call.1} parent=1 // pred_region
      %22 = dma.done [#allocation3], 1024
    $region9: #{tpu_custom_call.1} parent=1 // pred_fallthru
      _
    %v23 = vld [vmem:[#allocation2] sm:$0xff]
    %v24 = vld [vmem:[#allocation2 + $0x8] sm:$0xff]
    %v25 = vld [vmem:[#allocation2 + $0x10] sm:$0xff]
    %v26 = vld [vmem:[#allocation2 + $0x18] sm:$0xff]
    %v27 = vld [vmem:[#allocation2 + $0x20] sm:$0xff]
    %v28 = vld [vmem:[#allocation2 + $0x28] sm:$0xff]
    %v29 = vld [vmem:[#allocation2 + $0x30] sm:$0xff]
    %v30 = vld [vmem:[#allocation2 + $0x38] sm:$0xff]
    %vm31 = vcmask 261120
    %v32 = vsel %vm31, %v23, 0.0
    %v33 = vrot.slane %v32, 4
    %v34 = vadd.f32 %v32, %v33
    %v35 = vrot.slane %v34, 2
    %v36 = vadd.f32 %v34, %v35
    %v37 = vrot.slane %v36, 1
    %v38 = vadd.f32 %v36, %v37
    %v39 = vsel %vm31, %v24, 0.0
    %v40 = vrot.slane %v39, 4
    %v41 = vadd.f32 %v39, %v40
    %v42 = vrot.slane %v41, 2
    %v43 = vadd.f32 %v41, %v42
    %v44 = vrot.slane %v43, 1
    %v45 = vadd.f32 %v43, %v44
    %v46 = vsel %vm31, %v25, 0.0
    %v47 = vrot.slane %v46, 4
    %v48 = vadd.f32 %v46, %v47
    %v49 = vrot.slane %v48, 2
    %v50 = vadd.f32 %v48, %v49
    %v51 = vrot.slane %v50, 1
    %v52 = vadd.f32 %v50, %v51
    %v53 = vsel %vm31, %v26, 0.0
    %v54 = vrot.slane %v53, 4
    %v55 = vadd.f32 %v53, %v54
    %v56 = vrot.slane %v55, 2
    %v57 = vadd.f32 %v55, %v56
    %v58 = vrot.slane %v57, 1
    %v59 = vadd.f32 %v57, %v58
    %v60 = vsel %vm31, %v27, 0.0
    %v61 = vrot.slane %v60, 4
    %v62 = vadd.f32 %v60, %v61
    %v63 = vrot.slane %v62, 2
    %v64 = vadd.f32 %v62, %v63
    %v65 = vrot.slane %v64, 1
    %v66 = vadd.f32 %v64, %v65
    %v67 = vsel %vm31, %v28, 0.0
    %v68 = vrot.slane %v67, 4
    %v69 = vadd.f32 %v67, %v68
    %v70 = vrot.slane %v69, 2
    %v71 = vadd.f32 %v69, %v70
    %v72 = vrot.slane %v71, 1
    %v73 = vadd.f32 %v71, %v72
    %v74 = vsel %vm31, %v29, 0.0
    %v75 = vrot.slane %v74, 4
    %v76 = vadd.f32 %v74, %v75
    %v77 = vrot.slane %v76, 2
    %v78 = vadd.f32 %v76, %v77
    %v79 = vrot.slane %v78, 1
    %v80 = vadd.f32 %v78, %v79
    %v81 = vsel %vm31, %v30, 0.0
    %v82 = vrot.slane %v81, 4
    %v83 = vadd.f32 %v81, %v82
    %v84 = vrot.slane %v83, 2
    %v85 = vadd.f32 %v83, %v84
    %v86 = vrot.slane %v85, 1
    %v87 = vadd.f32 %v85, %v86
    %vm96 = vcmask 1041409
    %v97 = vsel %vm96, %v45, %v38
    %vm98 = vcmask 1042434
    %v99 = vsel %vm98, %v52, %v97
    %vm100 = vcmask 1043459
    %v101 = vsel %vm100, %v59, %v99
    %vm102 = vcmask 1044484
    %v103 = vsel %vm102, %v66, %v101
    %vm104 = vcmask 1045509
    %v105 = vsel %vm104, %v73, %v103
    %vm106 = vcmask 1046534
    %v107 = vsel %vm106, %v80, %v105
    %vm108 = vcmask 1047559
    %v109 = vsel %vm108, %v87, %v107
    %111 = vst.msk [vmem:[#allocation5] sm:$0xff] %vm31, %v109
    // Predicated region
    $region10: #{tpu_custom_call.1} parent=1 // pred_check
      _
    $region11: #{tpu_custom_call.1} parent=1 // pred_check_branch
      %113 = sbr.rel (0) target = $region13
    $region12: #{tpu_custom_call.1} parent=1 // pred_region
      %s115 = ssub.s32 128, 128
      %116 = vsyncadd [#allocation4], %s115
      %s118 = sshll.u32 [#allocation5], 4
      %s119 = int_to_ptr.vmem [resolvable:$true] %s118
      %121 = dma.vmem_to_hbm [thread:$0]  %s119, 128, %s1, [#allocation4]
    $region13: #{tpu_custom_call.1} parent=1 // pred_fallthru
      _
    // Predicated region
    $region14: #{tpu_custom_call.1} parent=1 // pred_check
      _
    $region15: #{tpu_custom_call.1} parent=1 // pred_check_branch
      %123 = sbr.rel (0) target = $region17
    $region16: #{tpu_custom_call.1} parent=1 // pred_region
      %124 = dma.done [#allocation4], 128
    $region17: #{tpu_custom_call.1} parent=1 // pred_fallthru
      _
    %125 = vsyncpa [#allocation3], 1
    %126 = vsyncpa [#allocation4], 1

</llo_original>
